<compile_context>
chip_gen: v5e
topology: v5e:2x2
jax: 0.10.0
libtpu: 0.0.40
codegen_flags: <defaults>
</compile_context>

<pallas_src>
import functools

import jax
import jax.numpy as jnp
from jax.experimental import pallas as pl
from jax.experimental.pallas import tpu as pltpu

_EPS = 1e-6  # F.pairwise_distance default eps


def _contrastive_kernel(o1_ref, o2_ref, lab_ref, out_ref, *,
                        margin, batch, block_rows, use_mxu_reduce):
    o1 = o1_ref[...].astype(jnp.float32)    # (TB, D)
    o2 = o2_ref[...].astype(jnp.float32)    # (TB, D)
    lab = lab_ref[...].astype(jnp.float32)  # (TB, 1)

    # Pairwise euclidean distance per row (matches torch: ||x1 - x2 + eps||_2).
    diff = o1 - o2 + _EPS
    sq = diff * diff
    if use_mxu_reduce:
        # Large D: push the cross-lane row reduction onto the MXU.
        ones = jnp.ones((sq.shape[-1], 1), jnp.float32)
        d2 = jnp.dot(sq, ones, preferred_element_type=jnp.float32)    # (TB, 1)
    else:
        d2 = jnp.sum(sq, axis=-1, keepdims=True)                      # (TB, 1)

    d = jnp.sqrt(d2)
    hinge = jnp.maximum(margin - d, 0.0)                              # clamp(margin - d, 0)
    per_row = (1.0 - lab) * d2 + lab * (hinge * hinge)                # (TB, 1)

    if batch % block_rows != 0:
        # Tail tile: zero out rows beyond the true batch so the wrapper sum is exact.
        row0 = pl.program_id(0) * block_rows
        rows = row0 + jax.lax.broadcasted_iota(jnp.int32, per_row.shape, 0)
        per_row = jnp.where(rows < batch, per_row, 0.0)

    out_ref[...] = per_row


def _choose_block_rows(batch, feat, itemsize,
                       target_block_bytes=2 * 1024 * 1024, max_rows=2048):
    """Pick a sublane tile: ~2 MiB per input block, multiple of 8, <= padded batch."""
    rows = target_block_bytes // max(1, feat * itemsize)
    rows = max(8, min(max_rows, int(rows)))
    rows = (rows // 8) * 8
    batch_padded = ((batch + 7) // 8) * 8
    return max(8, min(rows, batch_padded))


def contrastive_loss(output1, output2, label, margin=2.0, block_rows=None):
    """output1, output2: (B, D); label: (B,) or (B, 1). Returns scalar f32 loss."""
    B, D = output1.shape
    label2d = label.reshape(B, 1)

    tb = block_rows if block_rows is not None else _choose_block_rows(
        B, D, jnp.dtype(output1.dtype).itemsize)
    assert tb % 8 == 0, "block_rows must be a multiple of 8 (sublane tiling)"
    grid = pl.cdiv(B, tb)
    b_pad = grid * tb

    kernel = functools.partial(
        _contrastive_kernel,
        margin=float(margin),
        batch=B,
        block_rows=tb,
        use_mxu_reduce=(D >= 512),
    )

    per_row = pl.pallas_call(
        kernel,
        out_shape=jax.ShapeDtypeStruct((b_pad, 1), jnp.float32),
        grid=(grid,),
        in_specs=[
            pl.BlockSpec((tb, D), lambda i: (i, 0)),
            pl.BlockSpec((tb, D), lambda i: (i, 0)),
            pl.BlockSpec((tb, 1), lambda i: (i, 0)),
        ],
        out_specs=pl.BlockSpec((tb, 1), lambda i: (i, 0)),
        compiler_params=pltpu.CompilerParams(
            dimension_semantics=("parallel",),
        ),
    )(output1, output2, label2d)

    # Masked tail rows are exactly 0, so summing the padded per-row output and
    # dividing by the true batch size gives the mean.
    return jnp.sum(per_row) / jnp.float32(B)


def _reference(output1, output2, label, margin=2.0):
    # Pure-JAX reference mirroring the PyTorch forward.
    diff = output1.astype(jnp.float32) - output2.astype(jnp.float32) + _EPS
    d = jnp.sqrt(jnp.sum(diff * diff, axis=-1))
    lab = label.astype(jnp.float32).reshape(-1)
    hinge = jnp.maximum(margin - d, 0.0)
    return jnp.mean((1.0 - lab) * d * d + lab * hinge * hinge)


if __name__ == "__main__":
    key = jax.random.PRNGKey(0)
    k1, k2, k3 = jax.random.split(key, 3)

    # Small Siamese-head shapes; B=20 with block_rows=8 exercises the tiled,
    # pipelined path including a masked ragged tail tile (20 = 2*8 + 4).
    B, D = 20, 32
    output1 = jax.random.normal(k1, (B, D), dtype=jnp.float32)
    output2 = jax.random.normal(k2, (B, D), dtype=jnp.float32)
    label = jax.random.bernoulli(k3, 0.5, (B,)).astype(jnp.float32)

    loss = contrastive_loss(output1, output2, label, margin=2.0, block_rows=8)
    loss = jax.block_until_ready(loss)

    ref = _reference(output1, output2, label, margin=2.0)
    assert jnp.allclose(loss, ref, rtol=1e-5, atol=1e-5), (loss, ref)

    print("KERNEL_OK")
</pallas_src>

<mosaic_0001>
module attributes {stable_mosaic.version = 11 : i64} {
  func.func @_contrastive_kernel(%arg0: i32, %arg1: memref<8x32xf32, #tpu.memory_space<vmem>>, %arg2: memref<8x32xf32, #tpu.memory_space<vmem>>, %arg3: memref<8x1xf32, #tpu.memory_space<vmem>>, %arg4: memref<8x1xf32, #tpu.memory_space<vmem>>) attributes {dimension_semantics = [#tpu.dimension_semantics<parallel>], iteration_bounds = array<i64: 3>, scalar_prefetch = 0 : i64, scratch_operands = 0 : i64, tpu.core_type = #tpu.core_type<tc>, window_params = [{transform_indices = @transform_0, window_bounds = array<i64: 8, 32>}, {transform_indices = @transform_1, window_bounds = array<i64: 8, 32>}, {transform_indices = @transform_2, window_bounds = array<i64: 8, 1>}, {transform_indices = @transform_3, window_bounds = array<i64: 8, 1>}]} {
    %c0 = arith.constant 0 : index
    %c0_0 = arith.constant 0 : index
    %0 = vector.load %arg1[%c0, %c0_0] : memref<8x32xf32, #tpu.memory_space<vmem>>, vector<8x32xf32>
    %c0_1 = arith.constant 0 : index
    %c0_2 = arith.constant 0 : index
    %1 = vector.load %arg2[%c0_1, %c0_2] : memref<8x32xf32, #tpu.memory_space<vmem>>, vector<8x32xf32>
    %c0_3 = arith.constant 0 : index
    %c0_4 = arith.constant 0 : index
    %2 = vector.load %arg3[%c0_3, %c0_4] : memref<8x1xf32, #tpu.memory_space<vmem>>, vector<8x1xf32>
    %3 = arith.subf %0, %1 : vector<8x32xf32>
    %cst = arith.constant 9.99999997E-7 : f32
    %4 = vector.broadcast %cst : f32 to vector<8x32xf32>
    %5 = arith.addf %3, %4 : vector<8x32xf32>
    %6 = arith.mulf %5, %5 : vector<8x32xf32>
    %cst_5 = arith.constant dense<0.000000e+00> : vector<8xf32>
    %7 = vector.multi_reduction <add>, %6, %cst_5 [1] : vector<8x32xf32> to vector<8xf32>
    %8 = vector.shape_cast %7 : vector<8xf32> to vector<8x1xf32>
    %9 = math.sqrt %8 : vector<8x1xf32>
    %cst_6 = arith.constant 2.000000e+00 : f32
    %10 = vector.broadcast %cst_6 : f32 to vector<8x1xf32>
    %11 = arith.subf %10, %9 : vector<8x1xf32>
    %cst_7 = arith.constant 0.000000e+00 : f32
    %12 = vector.broadcast %cst_7 : f32 to vector<8x1xf32>
    %13 = arith.maximumf %11, %12 : vector<8x1xf32>
    %cst_8 = arith.constant 1.000000e+00 : f32
    %14 = vector.broadcast %cst_8 : f32 to vector<8x1xf32>
    %15 = arith.subf %14, %2 : vector<8x1xf32>
    %16 = arith.mulf %15, %8 : vector<8x1xf32>
    %17 = arith.mulf %13, %13 : vector<8x1xf32>
    %18 = arith.mulf %2, %17 : vector<8x1xf32>
    %19 = arith.addf %16, %18 : vector<8x1xf32>
    %c8_i32 = arith.constant 8 : i32
    %20 = arith.muli %arg0, %c8_i32 : i32
    %21 = tpu.iota {dimensions = array<i32: 0>} : vector<8x1xi32>
    %22 = vector.broadcast %20 : i32 to vector<8x1xi32>
    %23 = arith.addi %22, %21 : vector<8x1xi32>
    %c20_i32 = arith.constant 20 : i32
    %24 = vector.broadcast %c20_i32 : i32 to vector<8x1xi32>
    %25 = arith.cmpi slt, %23, %24 : vector<8x1xi32>
    %cst_9 = arith.constant 0.000000e+00 : f32
    %26 = vector.broadcast %cst_9 : f32 to vector<8x1xf32>
    %27 = arith.select %25, %19, %26 : vector<8x1xi1>, vector<8x1xf32>
    %c0_10 = arith.constant 0 : index
    %c0_11 = arith.constant 0 : index
    %28 = vector.load %arg4[%c0_10, %c0_11] : memref<8x1xf32, #tpu.memory_space<vmem>>, vector<8x1xf32>
    tpu.vector_store %arg4[%c0_10, %c0_11], %27 {strides = array<i32>} : memref<8x1xf32, #tpu.memory_space<vmem>>, vector<8x1xf32>,
    return
  }
  func.func @transform_0(%arg0: i32) -> (i32, i32) {
    %c0_i32 = arith.constant 0 : i32
    %c0_i32_0 = arith.constant 0 : i32
    return %arg0, %c0_i32 : i32, i32
  }
  func.func @transform_1(%arg0: i32) -> (i32, i32) {
    %c0_i32 = arith.constant 0 : i32
    %c0_i32_0 = arith.constant 0 : i32
    return %arg0, %c0_i32 : i32, i32
  }
  func.func @transform_2(%arg0: i32) -> (i32, i32) {
    %c0_i32 = arith.constant 0 : i32
    %c0_i32_0 = arith.constant 0 : i32
    return %arg0, %c0_i32 : i32, i32
  }
  func.func @transform_3(%arg0: i32) -> (i32, i32) {
    %c0_i32 = arith.constant 0 : i32
    %c0_i32_0 = arith.constant 0 : i32
    return %arg0, %c0_i32 : i32, i32
  }
}

</mosaic_0001>

<llo_original>
// kernel: tpu_custom_call.1
$region0: #{tpu_custom_call.1}
  #allocation0 [shape = 'u32[]', space=smem, size = 0x4, offset = 0x4, fixed_abs, tag = 'smem constant byte address 0x4 - core index']
  #allocation1 [shape = 'u32[72,128]{1,0:T(1,128)}', space=vmem, size = 0x9000, scoped, tag = 'internal scratch']
  %s0 = inlined_call_operand.vmem [shape: f32[20,32], index: 0, kind: input, shape index: {}]
  %s1 = inlined_call_operand.hbm [shape: f32[20,32], index: 1, kind: input, shape index: {}]
  %s2 = inlined_call_operand.vmem [shape: f32[20,1], index: 2, kind: input, shape index: {}]
  %s3 = inlined_call_operand.vmem [shape: f32[24,1], index: 3, kind: output, shape index: {}]
  %s4 = sld [smem:[#allocation0]]
  $region49: #{tpu_custom_call.1} parent=0
    _
  %s6 = ssub.s32 1, %s4
  %s7 = scalar_select 0, %s6, %s4
  $region1: #{tpu_custom_call.1} parent=0
    #allocation2 [shape = 'u8[8192]{0}', space=vmem, size = 0x2000, scoped, tag = 'input window, operand 1']
    #allocation3 [shape = 's32[2]{0}', space=sflag, size = 0x8, scoped, tag = 'scoped memory for tpu_custom_call.1']
    %8 = vsyncpa [#allocation3], 0
    %s9 = scalar_lea.sflag [#allocation3], 1
    %10 = vsyncpa %s9, 0
    loop: start=0, step=1, limit=5
    $region2: #{tpu_custom_call.1} parent=1 // loop_pre_header
      _
    $region3: #{tpu_custom_call.1} parent=1 // loop_header
      %s12 = sphi 0, %s16
      %p13 = scmp.ge.s32.totalorder %s12, 5
      %s22 = sphi 0, %s24
      %s25 = sphi 0, %s22
      %s26 = sphi 0, %s25
      %s42 = sphi 0, %s26
      %s48 = sphi 0, %s50
      %s51 = sphi 0, %s48
      %s52 = sphi 0, %s51
      %s68 = sphi 0, %s52
      %s74 = sphi 0, %s76
      %s77 = sphi 0, %s74
      %s78 = sphi 0, %s77
      %s94 = sphi 0, %s78
      %s100 = sphi 0, %s102
      %s103 = sphi 0, %s100
      %s104 = sphi 0, %s103
      %s120 = sphi 0, %s104
    $region4: #{tpu_custom_call.1} parent=1 // loop_header_branch
      %15 = sbr.rel (%p13) target = $region8
    $region5: #{tpu_custom_call.1} parent=1 // loop_body
      %s17 = ssub.s32 %s12, 1
      %s18 = ssub.s32 %s12, 2
      %s19 = sadd.s32 %s12, 1
      %s20 = ssub.s32 %s12, %s19
      %p21 = scmp.eq.s32.totalorder %s20, 0
      %s23 = sadd.s32 %s22, 1
      %s24 = scalar_select %p21, %s22, %s23
      %p27 = pneg %p21
      %p28 = scmp.eq.s32.totalorder %s12, 2
      %p29 = por %p27, %p28
      %p30 = scmp.ne.s32.totalorder %s22, %s25
      %p31 = scmp.eq.s32.totalorder %s12, 0
      %p32 = por %p30, %p31
      %p33 = scmp.ne.s32.totalorder %s22, %s25
      %p34 = scmp.eq.s32.totalorder %s17, 2
      %p35 = por %p33, %p34
      %p36 = scmp.ne.s32.totalorder %s25, %s26
      %p37 = scmp.eq.s32.totalorder %s17, 0
      %p38 = por %p36, %p37
      %p39 = scmp.ne.s32.totalorder %s25, %s26
      %p40 = scmp.eq.s32.totalorder %s18, 2
      %p41 = por %p39, %p40
      %p43 = scmp.ne.s32.totalorder %s26, %s42
      %p44 = scmp.eq.s32.totalorder %s18, 0
      %p45 = por %p43, %p44
      %s46 = ssub.s32 %s12, %s19
      %p47 = scmp.eq.s32.totalorder %s46, 0
      %s49 = sadd.s32 %s48, 1
      %s50 = scalar_select %p47, %s48, %s49
      %p53 = pneg %p47
      %p54 = scmp.eq.s32.totalorder %s12, 2
      %p55 = por %p53, %p54
      %p56 = scmp.ne.s32.totalorder %s48, %s51
      %p57 = scmp.eq.s32.totalorder %s12, 0
      %p58 = por %p56, %p57
      %p59 = scmp.ne.s32.totalorder %s48, %s51
      %p60 = scmp.eq.s32.totalorder %s17, 2
      %p61 = por %p59, %p60
      %p62 = scmp.ne.s32.totalorder %s51, %s52
      %p63 = scmp.eq.s32.totalorder %s17, 0
      %p64 = por %p62, %p63
      %p65 = scmp.ne.s32.totalorder %s51, %s52
      %p66 = scmp.eq.s32.totalorder %s18, 2
      %p67 = por %p65, %p66
      %p69 = scmp.ne.s32.totalorder %s52, %s68
      %p70 = scmp.eq.s32.totalorder %s18, 0
      %p71 = por %p69, %p70
      %s72 = ssub.s32 %s12, %s19
      %p73 = scmp.eq.s32.totalorder %s72, 0
      %s75 = sadd.s32 %s74, 1
      %s76 = scalar_select %p73, %s74, %s75
      %p79 = pneg %p73
      %p80 = scmp.eq.s32.totalorder %s12, 2
      %p81 = por %p79, %p80
      %p82 = scmp.ne.s32.totalorder %s74, %s77
      %p83 = scmp.eq.s32.totalorder %s12, 0
      %p84 = por %p82, %p83
      %p85 = scmp.ne.s32.totalorder %s74, %s77
      %p86 = scmp.eq.s32.totalorder %s17, 2
      %p87 = por %p85, %p86
      %p88 = scmp.ne.s32.totalorder %s77, %s78
      %p89 = scmp.eq.s32.totalorder %s17, 0
      %p90 = por %p88, %p89
      %p91 = scmp.ne.s32.totalorder %s77, %s78
      %p92 = scmp.eq.s32.totalorder %s18, 2
      %p93 = por %p91, %p92
      %p95 = scmp.ne.s32.totalorder %s78, %s94
      %p96 = scmp.eq.s32.totalorder %s18, 0
      %p97 = por %p95, %p96
      %s98 = ssub.s32 %s12, %s19
      %p99 = scmp.eq.s32.totalorder %s98, 0
      %s101 = sadd.s32 %s100, 1
      %s102 = scalar_select %p99, %s100, %s101
      %p105 = pneg %p99
      %p106 = scmp.eq.s32.totalorder %s12, 2
      %p107 = por %p105, %p106
      %p108 = scmp.ne.s32.totalorder %s100, %s103
      %p109 = scmp.eq.s32.totalorder %s12, 0
      %p110 = por %p108, %p109
      %p111 = scmp.ne.s32.totalorder %s100, %s103
      %p112 = scmp.eq.s32.totalorder %s17, 2
      %p113 = por %p111, %p112
      %p114 = scmp.ne.s32.totalorder %s103, %s104
      %p115 = scmp.eq.s32.totalorder %s17, 0
      %p116 = por %p114, %p115
      %p117 = scmp.ne.s32.totalorder %s103, %s104
      %p118 = scmp.eq.s32.totalorder %s18, 2
      %p119 = por %p117, %p118
      %p121 = scmp.ne.s32.totalorder %s104, %s120
      %p122 = scmp.eq.s32.totalorder %s18, 0
      %p123 = por %p121, %p122
      %p124 = scmp.le.s32.totalorder 1, %s12
      %p125 = scmp.lt.s32.totalorder %s12, 4
      %p126 = pnand %p124, %p125
      %p127 = pneg %p126
      // Predicated region
      $region9: #{tpu_custom_call.1} parent=5 // pred_check
        _
      $region10: #{tpu_custom_call.1} parent=5 // pred_check_branch
        %129 = sbr.rel (%p126) target = $region12
      $region11: #{tpu_custom_call.1} parent=5 // pred_region
        %s130 = ssub.s32 %s12, 1
      $region12: #{tpu_custom_call.1} parent=5 // pred_fallthru
        _
      %p131 = scmp.lt.s32.totalorder %s12, 3
      // Predicated region
      $region13: #{tpu_custom_call.1} parent=5 // pred_check
        %p132 = pneg %p131
      $region14: #{tpu_custom_call.1} parent=5 // pred_check_branch
        %134 = sbr.rel (%p132) target = $region16
      $region15: #{tpu_custom_call.1} parent=5 // pred_region
        // Predicated region
        $region17: #{tpu_custom_call.1} parent=15 // pred_check
          %p135 = pneg %p32
        $region18: #{tpu_custom_call.1} parent=15 // pred_check_branch
          %137 = sbr.rel (%p135) target = $region20
        $region19: #{tpu_custom_call.1} parent=15 // pred_region
          %p138 = scmp.lt.s32.totalorder %s12, 2
          %s139 = scalar_select %p138, %s12, 2
          %s140 = smul.addr %s139, 8
          %s141 = scalar_lea.vmem %s0, %s140
        $region20: #{tpu_custom_call.1} parent=15 // pred_fallthru
          _
        // Predicated region
        $region21: #{tpu_custom_call.1} parent=15 // pred_check
          %p142 = pneg %p58
        $region22: #{tpu_custom_call.1} parent=15 // pred_check_branch
          %144 = sbr.rel (%p142) target = $region24
        $region23: #{tpu_custom_call.1} parent=15 // pred_region
          %s145 = sand.u32 %s48, 1
          %s146 = scalar_lea.sflag [#allocation3], %s145
          %s147 = sand.u32 %s48, 1
          %s148 = smul.addr %s147, 8
          %s149 = scalar_lea.vmem [#allocation2], %s148
          %151 = vsyncadd %s146, 0
          %s152 = smul.addr %s12, 8
          %s153 = scalar_lea.hbm %s1, %s152
          %s155 = sshll.u32 %s153, 4
          %s156 = int_to_ptr.hbm [resolvable:$true] %s155
          %s157 = sshll.u32 %s149, 4
          %s158 = int_to_ptr.vmem [resolvable:$true] %s157
          %160 = dma.hbm_to_vmem [thread:$0]  %s156, 128, %s158, %s146
        $region24: #{tpu_custom_call.1} parent=15 // pred_fallthru
          _
        // Predicated region
        $region25: #{tpu_custom_call.1} parent=15 // pred_check
          %p161 = pneg %p84
        $region26: #{tpu_custom_call.1} parent=15 // pred_check_branch
          %163 = sbr.rel (%p161) target = $region28
        $region27: #{tpu_custom_call.1} parent=15 // pred_region
          %p164 = scmp.lt.s32.totalorder %s12, 2
          %s165 = scalar_select %p164, %s12, 2
          %s166 = smul.addr %s165, 8
          %s167 = scalar_lea.vmem %s2, %s166
        $region28: #{tpu_custom_call.1} parent=15 // pred_fallthru
          _
      $region16: #{tpu_custom_call.1} parent=5 // pred_fallthru
        _
      %p168 = scmp.le.s32.totalorder 1, %s12
      %p169 = scmp.lt.s32.totalorder %s12, 4
      %p170 = pnand %p168, %p169
      %p171 = pneg %p170
      // Predicated region
      $region29: #{tpu_custom_call.1} parent=5 // pred_check
        _
      $region30: #{tpu_custom_call.1} parent=5 // pred_check_branch
        %173 = sbr.rel (%p170) target = $region32
      $region31: #{tpu_custom_call.1} parent=5 // pred_region
        %s174 = ssub.s32 %s12, 1
        %s175 = sand.u32 %s51, 1
        %s176 = scalar_lea.sflag [#allocation3], %s175
        %s177 = sand.u32 %s51, 1
        %s178 = smul.addr %s177, 8
        %s179 = scalar_lea.vmem [#allocation2], %s178
        // Predicated region
        $region33: #{tpu_custom_call.1} parent=31 // pred_check
          %p180 = pneg %p64
        $region34: #{tpu_custom_call.1} parent=31 // pred_check_branch
          %182 = sbr.rel (%p180) target = $region36
        $region35: #{tpu_custom_call.1} parent=31 // pred_region
          %184 = dma.done %s176, 128
        $region36: #{tpu_custom_call.1} parent=31 // pred_fallthru
          _
        %p185 = scmp.lt.s32.totalorder %s17, 2
        %s186 = scalar_select %p185, %s17, 2
        %s187 = smul.addr %s186, 8
        %s188 = scalar_lea.vmem %s0, %s187
        %p189 = pneg %p38
        %p190 = pneg %p35
        %s191 = sand.u32 %s51, 1
        %s192 = scalar_lea.sflag [#allocation3], %s191
        %s193 = sand.u32 %s51, 1
        %s194 = smul.addr %s193, 8
        %s195 = scalar_lea.vmem [#allocation2], %s194
        %p196 = pneg %p64
        %p197 = pneg %p61
        %p198 = scmp.lt.s32.totalorder %s17, 2
        %s199 = scalar_select %p198, %s17, 2
        %s200 = smul.addr %s199, 8
        %s201 = scalar_lea.vmem %s2, %s200
        %p202 = pneg %p90
        %p203 = pneg %p87
        %p204 = pneg %p116
        %p205 = pneg %p113
        %p206 = scmp.lt.s32.totalorder %s17, 2
        %s207 = scalar_select %p206, %s17, 2
        %s208 = smul.addr %s207, 8
        %s209 = scalar_lea.vmem %s3, %s208
        %p210 = scmp.lt.s32.totalorder %s17, 2
        %s211 = scalar_select %p210, %s17, 2
        %s212 = smul.addr %s211, 8
        %s213 = scalar_lea.vmem %s0, %s212
        %p214 = scmp.lt.s32.totalorder %s17, 2
        %s215 = scalar_select %p214, %s17, 2
        %s216 = smul.addr %s215, 8
        %s217 = scalar_lea.vmem %s2, %s216
        %p218 = scmp.lt.s32.totalorder %s17, 2
        %s219 = scalar_select %p218, %s17, 2
        %s220 = smul.addr %s219, 8
        %s221 = scalar_lea.vmem %s3, %s220
        %v222 = vld [vmem:[%s213] sm:$0xff]
        %v223 = vld [vmem:[%s179] sm:$0xff]
        %v224 = vld [vmem:[%s217] sm:$0xff]
        %v225 = vsub.f32 %v222, %v223
        %v226 = vadd.f32 %v225, 1e-06
        %v227 = vmul.f32 %v226, %v226
        %vm228 = vcmask 261120
        %v229 = vsel %vm228, %v227, 0.0
        %230 = vadd.xlane.f32.xlu0 %v229
        %v231 = vpop.xlane.xlu0 %230
        %v232 = vrsqrt.pop %v231
        %v233 = vmul.f32 %v232, %v231
        %v234 = vmul.f32 %v233, %v232
        %v235 = vmul.f32 0.5, %v234
        %v236 = vsub.f32 1.5, %v235
        %v237 = vmul.f32 %v232, %v236
        %v238 = vmul.f32 %v231, %v237
        %vm239 = vcmp.eq.f32.partialorder %v231, inf
        %v240 = vsel %vm239, %v231, %v238
        %vm241 = vcmp.eq.f32.partialorder %v231, 0.0
        %v242 = vand.u32 %v231, 2147483648
        %v243 = vsel %vm241, %v242, %v240
        %v244 = vsub.f32 2.0, %v243
        %v245 = vmax.f32 %v244, 0.0
        %v246 = vsub.f32 1.0, %v224
        %v247 = vmul.f32 %v246, %v231
        %v248 = vmul.f32 %v245, %v245
        %v249 = vmul.f32 %v224, %v248
        %v250 = vadd.f32 %v247, %v249
        %s251 = smul.u32 %s17, 8
        %v252 = vlaneseq
        %v253 = vshrl.u32 %v252, 7
        %v254 = vstv %s251
        %v255 = vadd.s32 %v254, %v253
        %vm256 = vcmp.lt.s32.totalorder %v255, 20
        %v257 = vsel %vm256, %v250, 0.0
        %vm258 = vcmask 7168
        %259 = vst.msk [vmem:[%s221] sm:$0xff] %vm258, %v257
        %p260 = scmp.lt.s32.totalorder %s17, 2
        %s261 = scalar_select %p260, %s17, 2
        %s262 = smul.addr %s261, 8
        %s263 = scalar_lea.vmem %s3, %s262
        // Predicated region
        $region37: #{tpu_custom_call.1} parent=31 // pred_check
          %p264 = pneg %p113
        $region38: #{tpu_custom_call.1} parent=31 // pred_check_branch
          %266 = sbr.rel (%p264) target = $region40
        $region39: #{tpu_custom_call.1} parent=31 // pred_region
          _
        $region40: #{tpu_custom_call.1} parent=31 // pred_fallthru
          _
      $region32: #{tpu_custom_call.1} parent=5 // pred_fallthru
        _
      %p267 = scmp.le.s32.totalorder 2, %s12
      // Predicated region
      $region41: #{tpu_custom_call.1} parent=5 // pred_check
        %p268 = pneg %p267
      $region42: #{tpu_custom_call.1} parent=5 // pred_check_branch
        %270 = sbr.rel (%p268) target = $region44
      $region43: #{tpu_custom_call.1} parent=5 // pred_region
        %s271 = ssub.s32 %s12, 2
        // Predicated region
        $region45: #{tpu_custom_call.1} parent=43 // pred_check
          %p272 = pneg %p119
        $region46: #{tpu_custom_call.1} parent=43 // pred_check_branch
          %274 = sbr.rel (%p272) target = $region48
        $region47: #{tpu_custom_call.1} parent=43 // pred_region
          %p275 = scmp.lt.s32.totalorder %s18, 2
          %s276 = scalar_select %p275, %s18, 2
          %s277 = smul.addr %s276, 8
          %s278 = scalar_lea.vmem %s3, %s277
        $region48: #{tpu_custom_call.1} parent=43 // pred_fallthru
          _
      $region44: #{tpu_custom_call.1} parent=5 // pred_fallthru
        _
    $region6: #{tpu_custom_call.1} parent=1 // loop_footer
      %s16 = sadd.s32 1, %s12
    $region7: #{tpu_custom_call.1} parent=1 // loop_footer_branch
      %11 = sbr.rel target = $region3
    $region8: #{tpu_custom_call.1} parent=1 // loop_exit
      _
    %279 = vsyncpa [#allocation3], 1
    %s280 = scalar_lea.sflag [#allocation3], 1
    %281 = vsyncpa %s280, 1

</llo_original>
